<compile_context>
chip_gen: v5e
topology: v5e:2x2
jax: 0.10.0
libtpu: 0.0.40
codegen_flags: <defaults>
</compile_context>

<pallas_src>
import functools

import jax
import jax.numpy as jnp
import numpy as np
from jax.experimental import pallas as pl
from jax.experimental.pallas import tpu as pltpu


def _round_up(v, m):
    return (v + m - 1) // m * m


def _vmem_budget_bytes():
    """<= ~75% of physical VMEM (96 MiB on v5e/v6e, 48 MiB on v7x)."""
    phys = 128 * 1024 * 1024
    try:
        info = pltpu.get_tpu_info()
        phys = int(getattr(info, "vmem_capacity_bytes", phys) or phys)
    except Exception:
        pass
    return max(32 * 1024 * 1024, min(phys * 3 // 4, phys - (16 << 20)))


def _gat_edge_kernel(gc_ref, eps_ref, ct_ref, se_ref, r_ref, out_ref, acc_ref,
                     *, heads, hidden, scp, negative_slope):
    """One edge tile per grid step; per-edge intermediates are feature-major [*, tE]."""
    H, Ch = heads, hidden
    HC = H * Ch
    step = pl.program_id(0)

    @pl.when(step == 0)
    def _():
        acc_ref[...] = jnp.zeros_like(acc_ref)

    ct = ct_ref[...]                          # [N, tE]  bf16 one-hot(col), node-major
    r = r_ref[...]                            # [tE, N]  bf16 one-hot(row), edge-major
    se = se_ref[...]                          # [SRp, tE] f32 = [s_src[row]; shift[row]]

    # Gather [x@W | s_dst | pos] at the edge's source (col) node: one bf16 MXU pass.
    gcol = jnp.dot(gc_ref[...], ct, preferred_element_type=jnp.float32)      # [GCWp, tE]

    tE = gcol.shape[1]
    x_col = gcol[:HC, :]                                                     # [HC, tE]
    logits = se[:H, :] + gcol[HC:HC + H, :]                                  # [H, tE]
    logits = jnp.where(logits >= 0.0, logits, negative_slope * logits)       # leaky relu
    # pos[col] * exp(logit - shift[row, head]); shift is a per-(row, head) upper
    # bound on the logits, so exp() never overflows.
    alpha = gcol[HC + H:HC + H + 1, :] * jnp.exp(logits - se[H:2 * H, :])    # [H, tE]

    # Packed [per-head messages | alpha | pad] built as a value (no VMEM round trip),
    # one bf16 cast feeding the scatter matmul.  Per-head scaling is a cheap
    # sublane broadcast on the VPU (no K=heads MXU pass).
    alpha_exp = jnp.concatenate(
        [jnp.broadcast_to(alpha[h:h + 1, :], (Ch, tE)) for h in range(H)], axis=0)
    pieces = [alpha_exp * x_col, alpha]
    if scp > HC + H:
        pieces.append(jnp.zeros((scp - HC - H, tE), jnp.float32))
    scat = jnp.concatenate(pieces, axis=0).astype(jnp.bfloat16)              # [SCPp, tE]

    # Fused scatter-add onto destination nodes.  Transposed accumulator: plain NN
    # bf16 matmul, MXU output lane dim = N, no per-step transpose.
    acc_ref[...] += jnp.dot(scat, r, preferred_element_type=jnp.float32)     # [SCPp, N]

    # Deferred softmax normalisation (1/rowsum depends only on the destination node).
    @pl.when(step == pl.num_programs(0) - 1)
    def _():
        acc = acc_ref[...]
        rowsum = acc[HC:HC + H, :]                                           # [H, N]
        # eps = 1e-10 * exp(shift) reproduces the reference's `rowsum**-1 + 1e-10`
        # exactly (in exact arithmetic) despite the per-row shift.
        inv = pl.reciprocal(rowsum, approx=True) + eps_ref[...]
        inv = jnp.where(rowsum > 0.0, inv, 0.0)   # isolated dest nodes -> 0 output
        n_blk = acc.shape[1]
        inv_full = jnp.concatenate(
            [jnp.broadcast_to(inv[h:h + 1, :], (Ch, n_blk)) for h in range(H)],
            axis=0)                                                          # [HC, N]
        out_ref[...] = acc[:HC, :] * inv_full


def gat_layer_pallas(x, edge_index, pos, W, att, *, heads, hidden,
                     negative_slope=0.2, edge_tile=None):
    """x: [N, Cin] f32, edge_index: [2, E] int32, pos: [N] f32,
       W: [Cin, heads*hidden] f32, att: [1, heads, 2*hidden] f32 -> [N, heads*hidden]."""
    f32 = jnp.float32
    x = x.astype(f32)
    W = W.astype(f32)
    att = att.astype(f32)
    pos = pos.astype(f32)

    N = x.shape[0]
    E = edge_index.shape[1]
    H, Ch = heads, hidden
    HC = H * Ch
    GCW = HC + H + 1                       # [x@W | s_dst | pos]
    GCWp = _round_up(GCW, 8)
    SCPp = _round_up(HC + H, 8)            # [messages | alpha(rowsum)] + pad
    SRp = _round_up(2 * H, 8)              # [s_src | shift] + pad

    # ---- node-level prologue, hoisted to XLA (runs once, full efficiency) ----
    xh = x @ W                                                        # [N, HC]
    xh3 = xh.reshape(N, H, Ch)
    att_src = att[0, :, :Ch]
    att_dst = att[0, :, Ch:]
    s_src = jnp.einsum("nhc,hc->nh", xh3, att_src)                    # [N, H]
    s_dst = jnp.einsum("nhc,hc->nh", xh3, att_dst)                    # [N, H]
    # per-(destination node, head) softmax shift: upper bound on that row's logits
    shift = jnp.maximum(s_src + jnp.max(s_dst, axis=0)[None, :], 0.0)  # [N, H]
    eps = (1e-10 * jnp.exp(shift)).T                                   # [H, N] f32 (epilogue)

    gc_pieces = [xh, s_dst, pos[:, None]]
    if GCWp > GCW:
        gc_pieces.append(jnp.zeros((N, GCWp - GCW), f32))
    gcT = jnp.concatenate(gc_pieces, axis=1).T.astype(jnp.bfloat16)    # [GCWp, N] bf16

    # ---- edge tiling + dense one-hot operands (bf16: 0/1 exact, half the HBM bytes) ----
    budget = _vmem_budget_bytes()
    resident = 2 * (GCWp * N * 2 + H * N * 4) + (SCPp + HC) * N * 4
    if edge_tile is None:
        per_edge = (2 * 2 * N * 2          # CT + R bf16 streams, double buffered
                    + 2 * SRp * 4          # per-edge scalar stream, double buffered
                    + (GCWp + 2 * SCPp + 4 * H) * 4)   # per-step f32 temporaries
        tE = (budget - resident - (8 << 20)) // max(per_edge, 1)
        tE = min(tE, 2048, _round_up(E, 128))
        tE = max(128, (tE // 128) * 128)
    else:
        tE = max(128, _round_up(edge_tile, 128))
    E_pad = _round_up(E, tE)
    n_tiles = E_pad // tE

    row = edge_index[0].astype(jnp.int32)
    col = edge_index[1].astype(jnp.int32)
    if E_pad > E:
        fill = jnp.full((E_pad - E,), -1, jnp.int32)   # -1 -> all-zero one-hot -> no-op edge
        row = jnp.concatenate([row, fill])
        col = jnp.concatenate([col, fill])

    node_ids = jnp.arange(N, dtype=jnp.int32)
    ct = (col[None, :] == node_ids[:, None]).astype(jnp.bfloat16)      # [N, E_pad] gather(col)
    r_em = (row[:, None] == node_ids[None, :]).astype(jnp.bfloat16)    # [E_pad, N] scatter(row)
    # TODO(synk): replace these dense one-hots with index-based gather/scatter for big graphs.

    # tiny per-edge row-side scalars (s_src[row], shift[row]) precomputed feature-major
    row_c = jnp.clip(row, 0, N - 1)   # pad edges contribute nothing (pos[col] == 0)
    se_pieces = [s_src[row_c], shift[row_c]]                           # [E_pad, 2H]
    if SRp > 2 * H:
        se_pieces.append(jnp.zeros((E_pad, SRp - 2 * H), f32))
    seT = jnp.concatenate(se_pieces, axis=1).T                         # [SRp, E_pad] f32

    kernel = functools.partial(_gat_edge_kernel, heads=H, hidden=Ch, scp=SCPp,
                               negative_slope=float(negative_slope))

    grid_spec = pltpu.PrefetchScalarGridSpec(
        num_scalar_prefetch=0,
        grid=(n_tiles,),
        in_specs=[
            pl.BlockSpec((GCWp, N), lambda e: (0, 0)),   # gc   (resident, bf16)
            pl.BlockSpec((H, N), lambda e: (0, 0)),      # eps  (resident, f32, epilogue only)
            pl.BlockSpec((N, tE), lambda e: (0, e)),     # col one-hot tile   (streamed, bf16)
            pl.BlockSpec((SRp, tE), lambda e: (0, e)),   # per-edge s_src/shift (streamed, f32)
            pl.BlockSpec((tE, N), lambda e: (e, 0)),     # row one-hot tile   (streamed, bf16)
        ],
        out_specs=pl.BlockSpec((HC, N), lambda e: (0, 0)),
        scratch_shapes=[pltpu.VMEM((SCPp, N), jnp.float32)],   # [msg_sum | rowsum] accumulator
    )

    out_t = pl.pallas_call(
        kernel,
        out_shape=jax.ShapeDtypeStruct((HC, N), jnp.float32),
        grid_spec=grid_spec,
        compiler_params=pltpu.CompilerParams(
            dimension_semantics=("arbitrary",),          # edge axis carries the accumulator
            vmem_limit_bytes=int(budget),
        ),
    )(gcT, eps, ct, seT, r_em)

    return out_t.T                                        # [N, heads*hidden]


# ---------------- reference (plain JAX) for verification ----------------
def gat_layer_ref(x, edge_index, pos, W, att, *, heads, hidden, negative_slope=0.2):
    N = x.shape[0]
    row, col = edge_index[0], edge_index[1]
    xh = (x @ W).reshape(N, heads, hidden)
    a = jnp.concatenate([xh[row], xh[col]], axis=-1)            # [E, H, 2Ch]
    a = (a * att).sum(-1)                                       # [E, H]
    a = jnp.where(a >= 0, a, negative_slope * a)
    a = jnp.exp(a)
    a = pos[col][:, None] * a
    rowsum = jnp.zeros((N, heads), a.dtype).at[row].add(a)
    inv = 1.0 / rowsum + 1e-10
    a = a * inv[row]
    out = jnp.zeros((N, heads, hidden), jnp.float32).at[row].add(a[..., None] * xh[col])
    return out.reshape(N, heads * hidden)


if __name__ == "__main__":
    key = jax.random.PRNGKey(0)
    N, in_channels, heads, out_channels, E = 16, 8, 4, 32, 32
    hidden = out_channels // heads          # concat=True
    negative_slope = 0.2

    k1, k2, k3, k4, k5, k6 = jax.random.split(key, 6)

    # deterministic xavier_uniform-style init, gain = leaky_relu gain
    gain = float(np.sqrt(2.0 / (1.0 + negative_slope ** 2)))
    bw = gain * np.sqrt(6.0 / (in_channels + heads * hidden))
    W = jax.random.uniform(k1, (in_channels, heads * hidden),
                           minval=-bw, maxval=bw, dtype=jnp.float32)
    ba = gain * np.sqrt(6.0 / (heads * 2 * hidden + 2 * hidden))
    att = jax.random.uniform(k2, (1, heads, 2 * hidden),
                             minval=-ba, maxval=ba, dtype=jnp.float32)

    x = jax.random.normal(k3, (N, in_channels), dtype=jnp.float32)
    row = jax.random.randint(k4, (E,), 0, N, dtype=jnp.int32)
    col = jax.random.randint(k5, (E,), 0, N, dtype=jnp.int32)
    edge_index = jnp.stack([row, col], axis=0)
    pos = jax.random.uniform(k6, (N,), minval=0.1, maxval=1.0, dtype=jnp.float32)

    out = gat_layer_pallas(x, edge_index, pos, W, att,
                           heads=heads, hidden=hidden,
                           negative_slope=negative_slope)
    out = jax.block_until_ready(out)

    ref = gat_layer_ref(x, edge_index, pos, W, att,
                        heads=heads, hidden=hidden,
                        negative_slope=negative_slope)

    # bf16 feature/message operands + approx reciprocal imply ~1e-2 relative error
    np.testing.assert_allclose(np.asarray(out), np.asarray(ref),
                               rtol=3e-2, atol=3e-2)
    print("KERNEL_OK")
</pallas_src>

<mosaic_0001>
module attributes {stable_mosaic.version = 11 : i64} {
  func.func @_gat_edge_kernel(%arg0: i32, %arg1: memref<40x16xbf16, #tpu.memory_space<vmem>>, %arg2: memref<4x16xf32, #tpu.memory_space<vmem>>, %arg3: memref<16x128xbf16, #tpu.memory_space<vmem>>, %arg4: memref<8x128xf32, #tpu.memory_space<vmem>>, %arg5: memref<128x16xbf16, #tpu.memory_space<vmem>>, %arg6: memref<32x16xf32, #tpu.memory_space<vmem>>, %arg7: memref<40x16xf32, #tpu.memory_space<vmem>>) attributes {dimension_semantics = [#tpu.dimension_semantics<arbitrary>], iteration_bounds = array<i64: 1>, scalar_prefetch = 0 : i64, scratch_operands = 1 : i64, tpu.core_type = #tpu.core_type<tc>, window_params = [{pipeline_mode = #tpu.pipeline_mode<synchronous>, transform_indices = @transform_0, window_bounds = array<i64: 40, 16>}, {pipeline_mode = #tpu.pipeline_mode<synchronous>, transform_indices = @transform_1, window_bounds = array<i64: 4, 16>}, {transform_indices = @transform_2, window_bounds = array<i64: 16, 128>}, {transform_indices = @transform_3, window_bounds = array<i64: 8, 128>}, {transform_indices = @transform_4, window_bounds = array<i64: 128, 16>}, {pipeline_mode = #tpu.pipeline_mode<synchronous>, transform_indices = @transform_5, window_bounds = array<i64: 32, 16>}]} {
    %c0_i32 = arith.constant 0 : i32
    %0 = arith.cmpi eq, %arg0, %c0_i32 : i32
    %1 = arith.extui %0 : i1 to i32
    %c0_i32_0 = arith.constant 0 : i32
    %2 = arith.cmpi ne, %1, %c0_i32_0 : i32
    scf.if %2 {
      %cst_18 = arith.constant 0.000000e+00 : f32
      %47 = vector.broadcast %cst_18 : f32 to vector<40x16xf32>
      %c0_19 = arith.constant 0 : index
      %c0_20 = arith.constant 0 : index
      %48 = vector.load %arg7[%c0_19, %c0_20] : memref<40x16xf32, #tpu.memory_space<vmem>>, vector<40x16xf32>
      tpu.vector_store %arg7[%c0_19, %c0_20], %47 {strides = array<i32>} : memref<40x16xf32, #tpu.memory_space<vmem>>, vector<40x16xf32>,
    } else {
    }
    %c0 = arith.constant 0 : index
    %c0_1 = arith.constant 0 : index
    %3 = vector.load %arg3[%c0, %c0_1] : memref<16x128xbf16, #tpu.memory_space<vmem>>, vector<16x128xbf16>
    %c0_2 = arith.constant 0 : index
    %c0_3 = arith.constant 0 : index
    %4 = vector.load %arg5[%c0_2, %c0_3] : memref<128x16xbf16, #tpu.memory_space<vmem>>, vector<128x16xbf16>
    %c0_4 = arith.constant 0 : index
    %c0_5 = arith.constant 0 : index
    %5 = vector.load %arg4[%c0_4, %c0_5] : memref<8x128xf32, #tpu.memory_space<vmem>>, vector<8x128xf32>
    %c0_6 = arith.constant 0 : index
    %c0_7 = arith.constant 0 : index
    %6 = vector.load %arg1[%c0_6, %c0_7] : memref<40x16xbf16, #tpu.memory_space<vmem>>, vector<40x16xbf16>
    %cst = arith.constant dense<0.000000e+00> : vector<40x128xf32>
    %7 = tpu.matmul %6, %3, %cst {dimension_numbers = #tpu.dot_dimension_numbers<[1], [0], [0], [1], [0, 0, 1, 1], [], []>} : vector<40x16xbf16>, vector<16x128xbf16>, vector<40x128xf32> -> vector<40x128xf32>
    %8 = vector.extract_strided_slice %7 {offsets = [0, 0], sizes = [32, 128], strides = [1, 1]} : vector<40x128xf32> to vector<32x128xf32>
    %9 = vector.extract_strided_slice %5 {offsets = [0, 0], sizes = [4, 128], strides = [1, 1]} : vector<8x128xf32> to vector<4x128xf32>
    %10 = vector.extract_strided_slice %7 {offsets = [32, 0], sizes = [4, 128], strides = [1, 1]} : vector<40x128xf32> to vector<4x128xf32>
    %11 = arith.addf %9, %10 : vector<4x128xf32>
    %cst_8 = arith.constant 0.000000e+00 : f32
    %12 = vector.broadcast %cst_8 : f32 to vector<4x128xf32>
    %13 = arith.cmpf oge, %11, %12 : vector<4x128xf32>
    %cst_9 = arith.constant 2.000000e-01 : f32
    %14 = vector.broadcast %cst_9 : f32 to vector<4x128xf32>
    %15 = arith.mulf %14, %11 : vector<4x128xf32>
    %16 = arith.select %13, %11, %15 : vector<4x128xi1>, vector<4x128xf32>
    %17 = vector.extract_strided_slice %7 {offsets = [36, 0], sizes = [1, 128], strides = [1, 1]} : vector<40x128xf32> to vector<1x128xf32>
    %18 = vector.extract_strided_slice %5 {offsets = [4, 0], sizes = [4, 128], strides = [1, 1]} : vector<8x128xf32> to vector<4x128xf32>
    %19 = arith.subf %16, %18 : vector<4x128xf32>
    %20 = math.exp %19 : vector<4x128xf32>
    %21 = vector.broadcast %17 : vector<1x128xf32> to vector<4x128xf32>
    %22 = arith.mulf %21, %20 : vector<4x128xf32>
    %23 = vector.extract_strided_slice %22 {offsets = [0, 0], sizes = [1, 128], strides = [1, 1]} : vector<4x128xf32> to vector<1x128xf32>
    %24 = vector.shape_cast %23 : vector<1x128xf32> to vector<1x128xf32>
    %25 = vector.broadcast %24 : vector<1x128xf32> to vector<8x128xf32>
    %26 = vector.extract_strided_slice %22 {offsets = [1, 0], sizes = [1, 128], strides = [1, 1]} : vector<4x128xf32> to vector<1x128xf32>
    %27 = vector.shape_cast %26 : vector<1x128xf32> to vector<1x128xf32>
    %28 = vector.broadcast %27 : vector<1x128xf32> to vector<8x128xf32>
    %29 = vector.extract_strided_slice %22 {offsets = [2, 0], sizes = [1, 128], strides = [1, 1]} : vector<4x128xf32> to vector<1x128xf32>
    %30 = vector.shape_cast %29 : vector<1x128xf32> to vector<1x128xf32>
    %31 = vector.broadcast %30 : vector<1x128xf32> to vector<8x128xf32>
    %32 = vector.extract_strided_slice %22 {offsets = [3, 0], sizes = [1, 128], strides = [1, 1]} : vector<4x128xf32> to vector<1x128xf32>
    %33 = vector.shape_cast %32 : vector<1x128xf32> to vector<1x128xf32>
    %34 = vector.broadcast %33 : vector<1x128xf32> to vector<8x128xf32>
    %35 = tpu.concatenate %25, %28, %31, %34 in 0 : vector<8x128xf32>, vector<8x128xf32>, vector<8x128xf32>, vector<8x128xf32> -> vector<32x128xf32>
    %36 = arith.mulf %35, %8 : vector<32x128xf32>
    %cst_10 = arith.constant 0.000000e+00 : f32
    %37 = vector.broadcast %cst_10 : f32 to vector<4x128xf32>
    %38 = tpu.concatenate %36, %22, %37 in 0 : vector<32x128xf32>, vector<4x128xf32>, vector<4x128xf32> -> vector<40x128xf32>
    %39 = arith.truncf %38 : vector<40x128xf32> to vector<40x128xbf16>
    %c0_11 = arith.constant 0 : index
    %c0_12 = arith.constant 0 : index
    %40 = vector.load %arg7[%c0_11, %c0_12] : memref<40x16xf32, #tpu.memory_space<vmem>>, vector<40x16xf32>
    %cst_13 = arith.constant dense<0.000000e+00> : vector<40x16xf32>
    %41 = tpu.matmul %39, %4, %cst_13 {dimension_numbers = #tpu.dot_dimension_numbers<[1], [0], [0], [1], [0, 0, 1, 1], [], []>} : vector<40x128xbf16>, vector<128x16xbf16>, vector<40x16xf32> -> vector<40x16xf32>
    %42 = arith.addf %40, %41 : vector<40x16xf32>
    %c0_14 = arith.constant 0 : index
    %c0_15 = arith.constant 0 : index
    %43 = vector.load %arg7[%c0_14, %c0_15] : memref<40x16xf32, #tpu.memory_space<vmem>>, vector<40x16xf32>
    tpu.vector_store %arg7[%c0_14, %c0_15], %42 {strides = array<i32>} : memref<40x16xf32, #tpu.memory_space<vmem>>, vector<40x16xf32>,
    %c0_i32_16 = arith.constant 0 : i32
    %44 = arith.cmpi eq, %arg0, %c0_i32_16 : i32
    %45 = arith.extui %44 : i1 to i32
    %c0_i32_17 = arith.constant 0 : i32
    %46 = arith.cmpi ne, %45, %c0_i32_17 : i32
    scf.if %46 {
      %c0_18 = arith.constant 0 : index
      %c0_19 = arith.constant 0 : index
      %47 = vector.load %arg7[%c0_18, %c0_19] : memref<40x16xf32, #tpu.memory_space<vmem>>, vector<40x16xf32>
      %48 = vector.extract_strided_slice %47 {offsets = [32, 0], sizes = [4, 16], strides = [1, 1]} : vector<40x16xf32> to vector<4x16xf32>
      %49 = tpu.reciprocal %48 {approx = true} : vector<4x16xf32> -> vector<4x16xf32>
      %c0_20 = arith.constant 0 : index
      %c0_21 = arith.constant 0 : index
      %50 = vector.load %arg2[%c0_20, %c0_21] : memref<4x16xf32, #tpu.memory_space<vmem>>, vector<4x16xf32>
      %51 = arith.addf %49, %50 : vector<4x16xf32>
      %cst_22 = arith.constant 0.000000e+00 : f32
      %52 = vector.broadcast %cst_22 : f32 to vector<4x16xf32>
      %53 = arith.cmpf ogt, %48, %52 : vector<4x16xf32>
      %cst_23 = arith.constant 0.000000e+00 : f32
      %54 = vector.broadcast %cst_23 : f32 to vector<4x16xf32>
      %55 = arith.select %53, %51, %54 : vector<4x16xi1>, vector<4x16xf32>
      %56 = vector.extract_strided_slice %55 {offsets = [0, 0], sizes = [1, 16], strides = [1, 1]} : vector<4x16xf32> to vector<1x16xf32>
      %57 = vector.shape_cast %56 : vector<1x16xf32> to vector<1x16xf32>
      %58 = vector.broadcast %57 : vector<1x16xf32> to vector<8x16xf32>
      %59 = vector.extract_strided_slice %55 {offsets = [1, 0], sizes = [1, 16], strides = [1, 1]} : vector<4x16xf32> to vector<1x16xf32>
      %60 = vector.shape_cast %59 : vector<1x16xf32> to vector<1x16xf32>
      %61 = vector.broadcast %60 : vector<1x16xf32> to vector<8x16xf32>
      %62 = vector.extract_strided_slice %55 {offsets = [2, 0], sizes = [1, 16], strides = [1, 1]} : vector<4x16xf32> to vector<1x16xf32>
      %63 = vector.shape_cast %62 : vector<1x16xf32> to vector<1x16xf32>
      %64 = vector.broadcast %63 : vector<1x16xf32> to vector<8x16xf32>
      %65 = vector.extract_strided_slice %55 {offsets = [3, 0], sizes = [1, 16], strides = [1, 1]} : vector<4x16xf32> to vector<1x16xf32>
      %66 = vector.shape_cast %65 : vector<1x16xf32> to vector<1x16xf32>
      %67 = vector.broadcast %66 : vector<1x16xf32> to vector<8x16xf32>
      %68 = tpu.concatenate %58, %61, %64, %67 in 0 : vector<8x16xf32>, vector<8x16xf32>, vector<8x16xf32>, vector<8x16xf32> -> vector<32x16xf32>
      %69 = vector.extract_strided_slice %47 {offsets = [0, 0], sizes = [32, 16], strides = [1, 1]} : vector<40x16xf32> to vector<32x16xf32>
      %70 = arith.mulf %69, %68 : vector<32x16xf32>
      %c0_24 = arith.constant 0 : index
      %c0_25 = arith.constant 0 : index
      %71 = vector.load %arg6[%c0_24, %c0_25] : memref<32x16xf32, #tpu.memory_space<vmem>>, vector<32x16xf32>
      tpu.vector_store %arg6[%c0_24, %c0_25], %70 {strides = array<i32>} : memref<32x16xf32, #tpu.memory_space<vmem>>, vector<32x16xf32>,
    } else {
    }
    return
  }
  func.func @transform_0(%arg0: i32) -> (i32, i32) {
    %c0_i32 = arith.constant 0 : i32
    %c0_i32_0 = arith.constant 0 : i32
    %c0_i32_1 = arith.constant 0 : i32
    return %c0_i32, %c0_i32_0 : i32, i32
  }
  func.func @transform_1(%arg0: i32) -> (i32, i32) {
    %c0_i32 = arith.constant 0 : i32
    %c0_i32_0 = arith.constant 0 : i32
    %c0_i32_1 = arith.constant 0 : i32
    return %c0_i32, %c0_i32_0 : i32, i32
  }
  func.func @transform_2(%arg0: i32) -> (i32, i32) {
    %c0_i32 = arith.constant 0 : i32
    %c0_i32_0 = arith.constant 0 : i32
    return %c0_i32, %arg0 : i32, i32
  }
  func.func @transform_3(%arg0: i32) -> (i32, i32) {
    %c0_i32 = arith.constant 0 : i32
    %c0_i32_0 = arith.constant 0 : i32
    return %c0_i32, %arg0 : i32, i32
  }
  func.func @transform_4(%arg0: i32) -> (i32, i32) {
    %c0_i32 = arith.constant 0 : i32
    %c0_i32_0 = arith.constant 0 : i32
    return %arg0, %c0_i32 : i32, i32
  }
  func.func @transform_5(%arg0: i32) -> (i32, i32) {
    %c0_i32 = arith.constant 0 : i32
    %c0_i32_0 = arith.constant 0 : i32
    %c0_i32_1 = arith.constant 0 : i32
    return %c0_i32, %c0_i32_0 : i32, i32
  }
}

</mosaic_0001>

<llo_original>
// kernel: tpu_custom_call.1
$region0: #{tpu_custom_call.1}
  #allocation0 [shape = 'u32[]', space=smem, size = 0x4, offset = 0x4, fixed_abs, tag = 'smem constant byte address 0x4 - core index']
  #allocation1 [shape = 'u32[72,128]{1,0:T(1,128)}', space=vmem, size = 0x9000, scoped, tag = 'internal scratch']
  #allocation2 [shape = 'f32[40,16]{1,0:T(8,128)}', space=vmem, size = 0x5000, scoped, tag = 'scratch operand']
  %s0 = inlined_call_operand.vmem [shape: bf16[40,16], index: 0, kind: input, shape index: {}]
  %s1 = inlined_call_operand.vmem [shape: f32[4,16], index: 1, kind: input, shape index: {}]
  %s2 = inlined_call_operand.vmem [shape: bf16[16,128], index: 2, kind: input, shape index: {}]
  %s3 = inlined_call_operand.vmem [shape: f32[8,128], index: 3, kind: input, shape index: {}]
  %s4 = inlined_call_operand.vmem [shape: bf16[128,16], index: 4, kind: input, shape index: {}]
  %s5 = inlined_call_operand.vmem [shape: f32[32,16], index: 5, kind: output, shape index: {}]
  %s6 = sld [smem:[#allocation0]]
  $region38: #{tpu_custom_call.1} parent=0
    _
  %s8 = ssub.s32 1, %s6
  %s9 = scalar_select 0, %s8, %s6
  // Predicated region
  $region2: #{tpu_custom_call.1} parent=0 // pred_check
    _
  $region3: #{tpu_custom_call.1} parent=0 // pred_check_branch
    %11 = sbr.rel (0) target = $region5
  $region4: #{tpu_custom_call.1} parent=0 // pred_region
    _
  $region5: #{tpu_custom_call.1} parent=0 // pred_fallthru
    _
  // Predicated region
  $region6: #{tpu_custom_call.1} parent=0 // pred_check
    _
  $region7: #{tpu_custom_call.1} parent=0 // pred_check_branch
    %13 = sbr.rel (0) target = $region9
  $region8: #{tpu_custom_call.1} parent=0 // pred_region
    _
  $region9: #{tpu_custom_call.1} parent=0 // pred_fallthru
    _
  // Predicated region
  $region10: #{tpu_custom_call.1} parent=0 // pred_check
    _
  $region11: #{tpu_custom_call.1} parent=0 // pred_check_branch
    %15 = sbr.rel (0) target = $region13
  $region12: #{tpu_custom_call.1} parent=0 // pred_region
    _
  $region13: #{tpu_custom_call.1} parent=0 // pred_fallthru
    _
  // Predicated region
  $region14: #{tpu_custom_call.1} parent=0 // pred_check
    _
  $region15: #{tpu_custom_call.1} parent=0 // pred_check_branch
    %17 = sbr.rel (0) target = $region17
  $region16: #{tpu_custom_call.1} parent=0 // pred_region
    _
  $region17: #{tpu_custom_call.1} parent=0 // pred_fallthru
    _
  // Predicated region
  $region18: #{tpu_custom_call.1} parent=0 // pred_check
    _
  $region19: #{tpu_custom_call.1} parent=0 // pred_check_branch
    %19 = sbr.rel (0) target = $region21
  $region20: #{tpu_custom_call.1} parent=0 // pred_region
    _
  $region21: #{tpu_custom_call.1} parent=0 // pred_fallthru
    _
  %p21 = scmp.eq.s32.totalorder 0, 0
  // Predicated region
  $region22: #{tpu_custom_call.1} parent=0 // pred_check
    %p22 = pneg %p21
  $region23: #{tpu_custom_call.1} parent=0 // pred_check_branch
    %24 = sbr.rel (%p22) target = $region25
  $region24: #{tpu_custom_call.1} parent=0 // pred_region
    %vm25 = vcmask 130048
    %26 = vst.msk [vmem:[#allocation2] sm:$0xff] %vm25, 0.0
    %27 = vst.msk [vmem:[#allocation2 + $0x8] sm:$0xff] %vm25, 0.0
    %28 = vst.msk [vmem:[#allocation2 + $0x10] sm:$0xff] %vm25, 0.0
    %29 = vst.msk [vmem:[#allocation2 + $0x18] sm:$0xff] %vm25, 0.0
    %30 = vst.msk [vmem:[#allocation2 + $0x20] sm:$0xff] %vm25, 0.0
  $region25: #{tpu_custom_call.1} parent=0 // pred_fallthru
    _
  %v31 = vld [vmem:[%s2] sm:$0xf]
  %v32 = vld [vmem:[%s2 + $0x4] sm:$0xf]
  %v33 = vld [vmem:[%s4] sm:$0xf]
  %v34 = vld [vmem:[%s4 + $0x4] sm:$0xf]
  %v35 = vld [vmem:[%s4 + $0x8] sm:$0xf]
  %v36 = vld [vmem:[%s4 + $0xc] sm:$0xf]
  %v37 = vld [vmem:[%s4 + $0x10] sm:$0xf]
  %v38 = vld [vmem:[%s4 + $0x14] sm:$0xf]
  %v39 = vld [vmem:[%s4 + $0x18] sm:$0xf]
  %v40 = vld [vmem:[%s4 + $0x1c] sm:$0xf]
  %v41 = vld [vmem:[%s4 + $0x20] sm:$0xf]
  %v42 = vld [vmem:[%s4 + $0x24] sm:$0xf]
  %v43 = vld [vmem:[%s4 + $0x28] sm:$0xf]
  %v44 = vld [vmem:[%s4 + $0x2c] sm:$0xf]
  %v45 = vld [vmem:[%s4 + $0x30] sm:$0xf]
  %v46 = vld [vmem:[%s4 + $0x34] sm:$0xf]
  %v47 = vld [vmem:[%s4 + $0x38] sm:$0xf]
  %v48 = vld [vmem:[%s4 + $0x3c] sm:$0xf]
  %v49 = vld [vmem:[%s3] sm:$0xff]
  %v50 = vld [vmem:[%s0] sm:$0xf]
  %v51 = vld [vmem:[%s0 + $0x4] sm:$0xf]
  %v52 = vld [vmem:[%s0 + $0x8] sm:$0xf]
  %v53 = vld [vmem:[%s0 + $0xc] sm:$0xf]
  %v54 = vld [vmem:[%s0 + $0x10] sm:$0xf]
  %v60 = vunpack.c.l.b16 %v50
  %v61 = vunpack.c.l.b16 %v51
  %v62 = vunpack.c.l.b16 %v52
  %v63 = vunpack.c.l.b16 %v53
  %v64 = vunpack.c.l.b16 %v54
  %v65 = vpack.c.b16 %v61, %v60
  %v66 = vpack.c.b16 %v63, %v62
  %v67 = vpack.c.b16 %v64, %v64
  %v70 = vunpack.c.l.b16 %v31
  %v71 = vunpack.c.l.b16 %v32
  %v72 = vpack.c.b16 %v71, %v70
  %vm74 = vcmask 130048
  %v76 = vsel %vm74, %v65, 0
  %v79 = vsel %vm74, %v66, 0
  %v82 = vsel %vm74, %v67, 0
  %84 = vmatpush.bf16.msra.mxu0 0
  %85 = vmatpush.bf16.msra.mxu0 0
  %86 = vmatpush.bf16.msra.mxu0 0
  %87 = vmatpush.bf16.msra.mxu0 0
  %88 = vmatpush.bf16.msra.mxu0 0
  %89 = vmatpush.bf16.msra.mxu0 0
  %90 = vmatpush.bf16.msra.mxu0 0
  %91 = vmatpush.bf16.msra.mxu0 %v72
  %92 = vmatmul.bf16.gmra.mxu0 %v76
  %v93 = vpop.f32.mrf.mxu0
  %v94 = vadd.f32 0.0, %v93
  %v95 = vpop.f32.mrf.mxu0
  %v96 = vadd.f32 0.0, %v95
  %97 = vmatmul.bf16.gmra.mxu0 %v79
  %v98 = vpop.f32.mrf.mxu0
  %v99 = vadd.f32 0.0, %v98
  %v100 = vpop.f32.mrf.mxu0
  %v101 = vadd.f32 0.0, %v100
  %102 = vmatmul.bf16.gmra.mxu0 %v82
  %v103 = vpop.f32.mrf.mxu0
  %v104 = vadd.f32 0.0, %v103
  %v105 = vpop.f32.mrf.mxu0
  %106 = vdwg.mxu0
  %v107 = vadd.f32 %v49, %v104
  %vm108 = vcmp.ge.f32.partialorder %v107, 0.0
  %v109 = vmul.f32 %v107, 0.2
  %v110 = vsel %vm108, %v107, %v109
  %v112 = vrot.slane %v49, 4
  %v114 = vsub.f32 %v110, %v112
  %v115 = vmul.f32 %v114, 1.442695
  %v116 = vpow.pop %v115
  %v117 = vperm.slane %v104, 4
  %v118 = vmul.f32 %v117, %v116
  %v119 = vperm.slane %v118, 0
  %v120 = vperm.slane %v118, 1
  %v121 = vperm.slane %v118, 2
  %v122 = vperm.slane %v118, 3
  %v123 = vmul.f32 %v119, %v94
  %v124 = vmul.f32 %v120, %v96
  %v125 = vmul.f32 %v121, %v99
  %v126 = vmul.f32 %v122, %v101
  %vm127 = vcmask 1043456
  %v128 = vsel %vm127, %v118, 0.0
  %v129 = vpack.c.bf16 %v124, %v123
  %v130 = vpack.c.bf16 %v126, %v125
  %v131 = vpack.c.bf16 %v128, %v128
  %v132 = vld [vmem:[#allocation2] sm:$0xff]
  %v133 = vld [vmem:[#allocation2 + $0x8] sm:$0xff]
  %v134 = vld [vmem:[#allocation2 + $0x10] sm:$0xff]
  %v135 = vld [vmem:[#allocation2 + $0x18] sm:$0xff]
  %v136 = vld [vmem:[#allocation2 + $0x20] sm:$0xff]
  %v153 = vunpack.c.l.b16 %v33
  %v154 = vunpack.c.l.b16 %v34
  %v155 = vunpack.c.l.b16 %v35
  %v156 = vunpack.c.l.b16 %v36
  %v157 = vunpack.c.l.b16 %v37
  %v158 = vunpack.c.l.b16 %v38
  %v159 = vunpack.c.l.b16 %v39
  %v160 = vunpack.c.l.b16 %v40
  %v161 = vunpack.c.l.b16 %v41
  %v162 = vunpack.c.l.b16 %v42
  %v163 = vunpack.c.l.b16 %v43
  %v164 = vunpack.c.l.b16 %v44
  %v165 = vunpack.c.l.b16 %v45
  %v166 = vunpack.c.l.b16 %v46
  %v167 = vunpack.c.l.b16 %v47
  %v168 = vunpack.c.l.b16 %v48
  %v169 = vpack.c.b16 %v154, %v153
  %v170 = vpack.c.b16 %v156, %v155
  %v171 = vpack.c.b16 %v158, %v157
  %v172 = vpack.c.b16 %v160, %v159
  %v173 = vpack.c.b16 %v162, %v161
  %v174 = vpack.c.b16 %v164, %v163
  %v175 = vpack.c.b16 %v166, %v165
  %v176 = vpack.c.b16 %v168, %v167
  %185 = vmatpush.bf16.msra.mxu0 %v176
  %186 = vmatpush.bf16.msra.mxu0 %v175
  %187 = vmatpush.bf16.msra.mxu0 %v174
  %188 = vmatpush.bf16.msra.mxu0 %v173
  %189 = vmatpush.bf16.msra.mxu0 %v172
  %190 = vmatpush.bf16.msra.mxu0 %v171
  %191 = vmatpush.bf16.msra.mxu0 %v170
  %192 = vmatpush.bf16.msra.mxu0 %v169
  %193 = vmatmul.bf16.gmra.mxu0 %v129
  %v194 = vpop.f32.mrf.mxu0
  %v195 = vadd.f32 0.0, %v194
  %v196 = vpop.f32.mrf.mxu0
  %v197 = vadd.f32 0.0, %v196
  %198 = vmatmul.bf16.gmra.mxu0 %v130
  %v199 = vpop.f32.mrf.mxu0
  %v200 = vadd.f32 0.0, %v199
  %v201 = vpop.f32.mrf.mxu0
  %v202 = vadd.f32 0.0, %v201
  %203 = vmatmul.bf16.gmra.mxu0 %v131
  %v204 = vpop.f32.mrf.mxu0
  %v205 = vadd.f32 0.0, %v204
  %v206 = vpop.f32.mrf.mxu0
  %207 = vdwg.mxu0
  %v208 = vadd.f32 %v132, %v195
  %v209 = vadd.f32 %v133, %v197
  %v210 = vadd.f32 %v134, %v200
  %v211 = vadd.f32 %v135, %v202
  %v212 = vadd.f32 %v136, %v205
  %213 = vst.msk [vmem:[#allocation2] sm:$0xff] %vm74, %v208
  %214 = vst.msk [vmem:[#allocation2 + $0x8] sm:$0xff] %vm74, %v209
  %215 = vst.msk [vmem:[#allocation2 + $0x10] sm:$0xff] %vm74, %v210
  %216 = vst.msk [vmem:[#allocation2 + $0x18] sm:$0xff] %vm74, %v211
  %217 = vst.msk [vmem:[#allocation2 + $0x20] sm:$0xff] %vm74, %v212
  // Predicated region
  $region26: #{tpu_custom_call.1} parent=0 // pred_check
    %p218 = pneg %p21
  $region27: #{tpu_custom_call.1} parent=0 // pred_check_branch
    %220 = sbr.rel (%p218) target = $region29
  $region28: #{tpu_custom_call.1} parent=0 // pred_region
    %v221 = vld [vmem:[#allocation2] sm:$0xff]
    %v222 = vld [vmem:[#allocation2 + $0x8] sm:$0xff]
    %v223 = vld [vmem:[#allocation2 + $0x10] sm:$0xff]
    %v224 = vld [vmem:[#allocation2 + $0x18] sm:$0xff]
    %v225 = vld [vmem:[#allocation2 + $0x20] sm:$0xff]
    %v226 = vrcp.pop %v225
    %v227 = vld [vmem:[%s1] sm:$0xf]
    %v228 = vadd.f32 %v226, %v227
    %vm229 = vcmp.gt.f32.partialorder %v225, 0.0
    %v230 = vsel %vm229, %v228, 0.0
    %v231 = vperm.slane %v230, 0
    %v232 = vperm.slane %v230, 1
    %v233 = vperm.slane %v230, 2
    %v234 = vperm.slane %v230, 3
    %v235 = vmul.f32 %v221, %v231
    %v236 = vmul.f32 %v222, %v232
    %v237 = vmul.f32 %v223, %v233
    %v238 = vmul.f32 %v224, %v234
    %239 = vst.msk [vmem:[%s5] sm:$0xff] %vm74, %v235
    %240 = vst.msk [vmem:[%s5 + $0x8] sm:$0xff] %vm74, %v236
    %241 = vst.msk [vmem:[%s5 + $0x10] sm:$0xff] %vm74, %v237
    %242 = vst.msk [vmem:[%s5 + $0x18] sm:$0xff] %vm74, %v238
  $region29: #{tpu_custom_call.1} parent=0 // pred_fallthru
    _
  // Predicated region
  $region30: #{tpu_custom_call.1} parent=0 // pred_check
    _
  $region31: #{tpu_custom_call.1} parent=0 // pred_check_branch
    %244 = sbr.rel (0) target = $region33
  $region32: #{tpu_custom_call.1} parent=0 // pred_region
    _
  $region33: #{tpu_custom_call.1} parent=0 // pred_fallthru
    _
  // Predicated region
  $region34: #{tpu_custom_call.1} parent=0 // pred_check
    _
  $region35: #{tpu_custom_call.1} parent=0 // pred_check_branch
    %246 = sbr.rel (0) target = $region37
  $region36: #{tpu_custom_call.1} parent=0 // pred_region
    _
  $region37: #{tpu_custom_call.1} parent=0 // pred_fallthru
    _

</llo_original>
